<compile_context>
chip_gen: v5e
topology: v5e:2x2
jax: 0.10.0
libtpu: 0.0.40
codegen_flags: <defaults>
</compile_context>

<pallas_src>
import functools

import jax
import jax.numpy as jnp
from jax import lax
from jax.experimental import pallas as pl
from jax.experimental.pallas import tpu as pltpu


def _vmem_capacity_bytes():
    """Generation-aware VMEM capacity; conservative (v7x) fallback."""
    try:
        return int(pltpu.get_tpu_info().vmem_capacity_bytes)
    except Exception:
        return 64 << 20


# ---------------------------------------------------------------------------
# Single-pass fused kernel: whole (C, S) slab per batch element.
# ---------------------------------------------------------------------------
def _fused_kernel(x_ref, w1_ref, b1_ref, w2_ref, b2_ref, wsp_ref, out_ref, *, inv_s):
    x = x_ref[0].astype(jnp.float32)                                     # (C, S)
    # Channel squeeze: spatial mean per channel.
    pooled = jnp.sum(x, axis=1, keepdims=True) * inv_s                   # (C, 1)
    # Linear(C -> hd) + ReLU   (w1 stored as (C, hd) == torch weight.T)
    h = jnp.sum(w1_ref[...] * pooled, axis=0, keepdims=True) + b1_ref[...]
    h = jnp.maximum(h, 0.0)                                              # (1, hd)
    # Linear(hd -> C)          (w2 stored as (C, hd) == torch weight)
    g = jnp.sum(w2_ref[...] * h, axis=1, keepdims=True) + b2_ref[...]    # (C, 1)
    chn_gate = jax.nn.sigmoid(g)
    # Spatial squeeze: 1x1x1 Conv3d(C -> 1, bias=False) == (1, C) @ (C, S) on the MXU.
    spa_gate = jax.nn.sigmoid(
        jnp.dot(wsp_ref[...], x, preferred_element_type=jnp.float32))    # (1, S)
    # spa_se + x + chn_se == x * (1 + spa_gate + chn_gate)
    out_ref[0] = (x * (1.0 + spa_gate + chn_gate)).astype(out_ref.dtype)


# ---------------------------------------------------------------------------
# Tiled phase 1: per-tile partial spatial sums (masked last tile of a cdiv grid).
# ---------------------------------------------------------------------------
def _partial_sum_kernel(x_ref, psum_ref, *, tile_s, total_s):
    s = pl.program_id(1)
    x = x_ref[0].astype(jnp.float32)                                     # (C, TS)
    lane = lax.broadcasted_iota(jnp.int32, x.shape, 1)
    valid = (s * tile_s + lane) < total_s
    x = jnp.where(valid, x, 0.0)
    psum_ref[0, 0] = jnp.sum(x, axis=1, keepdims=True)                   # (C, 1)


# ---------------------------------------------------------------------------
# Tiled phase 2: spatial gate (MXU) + fused elementwise output.
# OOB lanes of the last tile produce garbage but stay lane-local and are dropped
# on writeback, so no mask is needed.
# ---------------------------------------------------------------------------
def _spa_apply_kernel(gate_ref, x_ref, wsp_ref, out_ref):
    x = x_ref[0].astype(jnp.float32)                                     # (C, TS)
    spa_gate = jax.nn.sigmoid(
        jnp.dot(wsp_ref[...], x, preferred_element_type=jnp.float32))    # (1, TS)
    out_ref[0] = (x * (1.0 + spa_gate + gate_ref[0])).astype(out_ref.dtype)


def sca3d(x, w1, b1, w2, b2, wsp, *, single_pass=None, max_tile_lanes=None,
          donate_x=False):
    B, C, D, H, W = x.shape
    S = D * H * W
    io_dtype = x.dtype
    itemsize = jnp.dtype(io_dtype).itemsize

    x3 = x.reshape(B, C, S)
    w1f = w1.astype(jnp.float32)                       # (C, HD)  torch Linear(C,hd).weight.T
    b1f = b1.reshape(1, -1).astype(jnp.float32)        # (1, HD)
    w2f = w2.astype(jnp.float32)                       # (C, HD)  torch Linear(hd,C).weight
    b2f = b2.reshape(-1, 1).astype(jnp.float32)        # (C, 1)
    wspf = wsp.reshape(1, C).astype(jnp.float32)       # (1, C)   Conv3d(C,1,1).weight
    HD = w1f.shape[1]

    vmem_cap = _vmem_capacity_bytes()
    slab_io = C * S * itemsize
    # 2x double-buffered in + 2x double-buffered out (I/O dtype) + ~4 f32-wide temps.
    sp_need = 4 * slab_io + 4 * C * S * 4 + (2 << 20)
    if single_pass is None:
        single_pass = sp_need <= int(vmem_cap * 0.7)

    # ---------------- single-pass fused path ----------------
    if single_pass:
        out3 = pl.pallas_call(
            functools.partial(_fused_kernel, inv_s=1.0 / S),
            out_shape=jax.ShapeDtypeStruct((B, C, S), io_dtype),
            grid_spec=pltpu.PrefetchScalarGridSpec(
                num_scalar_prefetch=0,
                grid=(B,),
                in_specs=[
                    pl.BlockSpec((1, C, S), lambda b: (b, 0, 0)),   # x slab
                    pl.BlockSpec((C, HD), lambda b: (0, 0)),        # w1
                    pl.BlockSpec((1, HD), lambda b: (0, 0)),        # b1
                    pl.BlockSpec((C, HD), lambda b: (0, 0)),        # w2
                    pl.BlockSpec((C, 1), lambda b: (0, 0)),         # b2
                    pl.BlockSpec((1, C), lambda b: (0, 0)),         # conv weight
                ],
                out_specs=pl.BlockSpec((1, C, S), lambda b: (b, 0, 0)),
            ),
            compiler_params=pltpu.CompilerParams(
                dimension_semantics=("parallel",),
                vmem_limit_bytes=int(min(vmem_cap, sp_need))),
            cost_estimate=pl.CostEstimate(
                flops=int(B * S * (6 * C + 2) + 4 * B * C * HD),
                transcendentals=int(B * (S + C)),
                bytes_accessed=int(2 * B * slab_io)),
            input_output_aliases=({0: 0} if donate_x else {}),
        )(x3, w1f, b1f, w2f, b2f, wspf)
        return out3.reshape(B, C, D, H, W)

    # ---------------- tiled two-phase path ----------------
    # Tile the lane (spatial) axis: TS multiple of 128, sized from VMEM capacity with
    # headroom for phase 2's double-buffered I/O blocks plus in-kernel f32 temporaries
    # (x upcast + broadcast products of the fused expression).
    per_lane = C * (4 * itemsize + 4 * 4)
    ts = int(vmem_cap * 0.45) // per_lane
    ts = max(128, (ts // 128) * 128)
    s_pad = int(pl.cdiv(S, 128)) * 128
    ts = min(ts, s_pad)
    if max_tile_lanes is not None:
        ts = max(128, min(ts, (int(max_tile_lanes) // 128) * 128))
    n_s = int(pl.cdiv(S, ts))

    blk_io = C * ts * itemsize
    vmem1 = int(min(vmem_cap, 2 * blk_io + 3 * C * ts * 4 + (2 << 20)))
    vmem2 = int(min(vmem_cap, 4 * blk_io + 4 * C * ts * 4 + (2 << 20)))

    # Phase 1: per-tile partial spatial sums.  No carried accumulator, so the whole
    # (B, n_s) grid is 'parallel' (both v7x TensorCores busy even when B == 1).
    psums = pl.pallas_call(
        functools.partial(_partial_sum_kernel, tile_s=ts, total_s=S),
        out_shape=jax.ShapeDtypeStruct((B, n_s, C, 1), jnp.float32),
        grid_spec=pltpu.PrefetchScalarGridSpec(
            num_scalar_prefetch=0,
            grid=(B, n_s),
            in_specs=[pl.BlockSpec((1, C, ts), lambda b, s: (b, 0, s))],
            out_specs=pl.BlockSpec((1, 1, C, 1), lambda b, s: (b, s, 0, 0)),
        ),
        compiler_params=pltpu.CompilerParams(
            dimension_semantics=("parallel", "parallel"),
            vmem_limit_bytes=vmem1),
        cost_estimate=pl.CostEstimate(
            flops=int(B * C * S),
            transcendentals=0,
            bytes_accessed=int(B * slab_io + B * n_s * C * 4)),
    )(x3)

    # Tiny channel-excitation MLP on the pooled means (O(B*C*HD) flops): plain JAX,
    # f32 throughout, negligible next to the bandwidth-bound Pallas phases.
    pooled = psums.reshape(B, n_s, C).sum(axis=1) * (1.0 / S)            # (B, C) f32
    h = jnp.maximum(pooled @ w1f + b1f, 0.0)                             # (B, HD)
    chn = jax.nn.sigmoid(h @ w2f.T + b2f.reshape(1, -1))                 # (B, C)
    chn_gate = chn.reshape(B, C, 1).astype(jnp.float32)

    # Phase 2: spatial gate + fused output, fully parallel grid.
    out3 = pl.pallas_call(
        _spa_apply_kernel,
        out_shape=jax.ShapeDtypeStruct((B, C, S), io_dtype),
        grid_spec=pltpu.PrefetchScalarGridSpec(
            num_scalar_prefetch=0,
            grid=(B, n_s),
            in_specs=[
                pl.BlockSpec((1, C, 1), lambda b, s: (b, 0, 0)),     # chn_gate
                pl.BlockSpec((1, C, ts), lambda b, s: (b, 0, s)),    # x tile
                pl.BlockSpec((1, C), lambda b, s: (0, 0)),           # conv weight (1, C)
            ],
            out_specs=pl.BlockSpec((1, C, ts), lambda b, s: (b, 0, s)),
        ),
        compiler_params=pltpu.CompilerParams(
            dimension_semantics=("parallel", "parallel"),
            vmem_limit_bytes=vmem2),
        cost_estimate=pl.CostEstimate(
            flops=int(B * S * (5 * C + 2)),
            transcendentals=int(B * S),
            bytes_accessed=int(2 * B * slab_io)),
        input_output_aliases=({1: 0} if donate_x else {}),
    )(chn_gate, x3, wspf)

    return out3.reshape(B, C, D, H, W)


def sca3d_ref(x, w1, b1, w2, b2, wsp):
    # Pure-JAX reference mirroring the PyTorch forward.
    xf = x.astype(jnp.float32)
    pooled = xf.mean(axis=(2, 3, 4))                                     # (B, C)
    h = jnp.maximum(pooled @ w1 + b1.reshape(1, -1), 0.0)                # (B, hd)
    chn_gate = jax.nn.sigmoid(h @ w2.T + b2.reshape(1, -1))              # (B, C)
    chn_se = xf * chn_gate[:, :, None, None, None]
    spa_gate = jax.nn.sigmoid(
        jnp.einsum('bcdhw,c->bdhw', xf, wsp.reshape(-1)))                # (B, D, H, W)
    spa_se = xf * spa_gate[:, None, :, :, :]
    return spa_se + xf + chn_se


if __name__ == "__main__":
    # Shapes consistent with the module: channel=32, reduction=16 -> hd=2.
    B, C, = 2, 32
    HD = C // 16

    key = jax.random.PRNGKey(0)
    kx, k1, k2, k3, k4, k5, kx2 = jax.random.split(key, 7)

    # Deterministic synthetic parameters (shapes per SCA3D.__init__).
    w1 = jax.random.normal(k1, (C, HD), dtype=jnp.float32) * 0.1   # Linear(C, hd).weight.T
    b1 = jax.random.normal(k2, (1, HD), dtype=jnp.float32) * 0.1   # Linear(C, hd).bias
    w2 = jax.random.normal(k3, (C, HD), dtype=jnp.float32) * 0.1   # Linear(hd, C).weight
    b2 = jax.random.normal(k4, (C, 1), dtype=jnp.float32) * 0.1    # Linear(hd, C).bias
    wsp = jax.random.normal(k5, (C, 1), dtype=jnp.float32) * 0.1   # Conv3d(C,1,1).weight

    # --- test 1: f32, small volume -> single-pass fused path ---
    D1, H1, W1 = 4, 8, 8
    x1 = jax.random.normal(kx, (B, C, D1, H1, W1), dtype=jnp.float32)
    out1 = jax.block_until_ready(sca3d(x1, w1, b1, w2, b2, wsp))
    ref1 = jax.block_until_ready(sca3d_ref(x1, w1, b1, w2, b2, wsp))
    assert out1.shape == (B, C, D1, H1, W1)
    assert jnp.allclose(out1, ref1, atol=1e-4, rtol=1e-4), "single-pass f32 mismatch"

    # --- test 2: f32, S not a multiple of 128, forced tiled path (cdiv + masked tile) ---
    D2, H2, W2 = 3, 7, 9   # S = 189
    x2 = jax.random.normal(kx2, (B, C, D2, H2, W2), dtype=jnp.float32)
    out2 = jax.block_until_ready(
        sca3d(x2, w1, b1, w2, b2, wsp, single_pass=False, max_tile_lanes=128))
    ref2 = jax.block_until_ready(sca3d_ref(x2, w1, b1, w2, b2, wsp))
    assert out2.shape == (B, C, D2, H2, W2)
    assert jnp.allclose(out2, ref2, atol=1e-4, rtol=1e-4), "tiled f32 mismatch"

    # --- test 3: bf16 I/O (f32 in-kernel math), forced tiled path ---
    x3b = x1.astype(jnp.bfloat16)
    out3 = jax.block_until_ready(
        sca3d(x3b, w1, b1, w2, b2, wsp, single_pass=False, max_tile_lanes=128))
    ref3 = jax.block_until_ready(sca3d_ref(x3b, w1, b1, w2, b2, wsp))
    assert out3.dtype == jnp.bfloat16
    assert jnp.allclose(out3.astype(jnp.float32), ref3, atol=3e-2, rtol=3e-2), \
        "tiled bf16 mismatch"

    print("KERNEL_OK")
</pallas_src>

<mosaic_0001>
module attributes {stable_mosaic.version = 11 : i64} {
  func.func @_fused_kernel(%arg0: i32, %arg1: memref<1x32x256xf32, #tpu.memory_space<vmem>>, %arg2: memref<32x2xf32, #tpu.memory_space<vmem>>, %arg3: memref<1x2xf32, #tpu.memory_space<vmem>>, %arg4: memref<32x2xf32, #tpu.memory_space<vmem>>, %arg5: memref<32x1xf32, #tpu.memory_space<vmem>>, %arg6: memref<1x32xf32, #tpu.memory_space<vmem>>, %arg7: memref<1x32x256xf32, #tpu.memory_space<vmem>>) attributes {dimension_semantics = [#tpu.dimension_semantics<parallel>], iteration_bounds = array<i64: 2>, scalar_prefetch = 0 : i64, scratch_operands = 0 : i64, tpu.core_type = #tpu.core_type<tc>, window_params = [{transform_indices = @transform_0, window_bounds = array<i64: 1, 32, 256>}, {pipeline_mode = #tpu.pipeline_mode<synchronous>, transform_indices = @transform_1, window_bounds = array<i64: 32, 2>}, {pipeline_mode = #tpu.pipeline_mode<synchronous>, transform_indices = @transform_2, window_bounds = array<i64: 1, 2>}, {pipeline_mode = #tpu.pipeline_mode<synchronous>, transform_indices = @transform_3, window_bounds = array<i64: 32, 2>}, {pipeline_mode = #tpu.pipeline_mode<synchronous>, transform_indices = @transform_4, window_bounds = array<i64: 32, 1>}, {pipeline_mode = #tpu.pipeline_mode<synchronous>, transform_indices = @transform_5, window_bounds = array<i64: 1, 32>}, {transform_indices = @transform_6, window_bounds = array<i64: 1, 32, 256>}]} {
    %c0 = arith.constant 0 : index
    %c0_0 = arith.constant 0 : index
    %c0_1 = arith.constant 0 : index
    %0 = vector.load %arg1[%c0, %c0_0, %c0_1] : memref<1x32x256xf32, #tpu.memory_space<vmem>>, vector<1x32x256xf32>
    %1 = vector.shape_cast %0 : vector<1x32x256xf32> to vector<32x256xf32>
    %cst = arith.constant dense<0.000000e+00> : vector<32xf32>
    %2 = vector.multi_reduction <add>, %1, %cst [1] : vector<32x256xf32> to vector<32xf32>
    %3 = vector.shape_cast %2 : vector<32xf32> to vector<32x1xf32>
    %cst_2 = arith.constant 3.906250e-03 : f32
    %4 = vector.broadcast %cst_2 : f32 to vector<32x1xf32>
    %5 = arith.mulf %3, %4 : vector<32x1xf32>
    %c0_3 = arith.constant 0 : index
    %c0_4 = arith.constant 0 : index
    %6 = vector.load %arg2[%c0_3, %c0_4] : memref<32x2xf32, #tpu.memory_space<vmem>>, vector<32x2xf32>
    %7 = vector.broadcast %5 : vector<32x1xf32> to vector<32x2xf32>
    %8 = arith.mulf %6, %7 : vector<32x2xf32>
    %cst_5 = arith.constant dense<0.000000e+00> : vector<2xf32>
    %9 = vector.multi_reduction <add>, %8, %cst_5 [0] : vector<32x2xf32> to vector<2xf32>
    %10 = vector.shape_cast %9 : vector<2xf32> to vector<1x2xf32>
    %c0_6 = arith.constant 0 : index
    %c0_7 = arith.constant 0 : index
    %11 = vector.load %arg3[%c0_6, %c0_7] : memref<1x2xf32, #tpu.memory_space<vmem>>, vector<1x2xf32>
    %12 = arith.addf %10, %11 : vector<1x2xf32>
    %cst_8 = arith.constant 0.000000e+00 : f32
    %13 = vector.broadcast %cst_8 : f32 to vector<1x2xf32>
    %14 = arith.maximumf %12, %13 : vector<1x2xf32>
    %c0_9 = arith.constant 0 : index
    %c0_10 = arith.constant 0 : index
    %15 = vector.load %arg4[%c0_9, %c0_10] : memref<32x2xf32, #tpu.memory_space<vmem>>, vector<32x2xf32>
    %16 = vector.broadcast %14 : vector<1x2xf32> to vector<32x2xf32>
    %17 = arith.mulf %15, %16 : vector<32x2xf32>
    %cst_11 = arith.constant dense<0.000000e+00> : vector<32xf32>
    %18 = vector.multi_reduction <add>, %17, %cst_11 [1] : vector<32x2xf32> to vector<32xf32>
    %19 = vector.shape_cast %18 : vector<32xf32> to vector<32x1xf32>
    %c0_12 = arith.constant 0 : index
    %c0_13 = arith.constant 0 : index
    %20 = vector.load %arg5[%c0_12, %c0_13] : memref<32x1xf32, #tpu.memory_space<vmem>>, vector<32x1xf32>
    %21 = arith.addf %19, %20 : vector<32x1xf32>
    %22 = arith.negf %21 : vector<32x1xf32>
    %23 = math.exp %22 : vector<32x1xf32>
    %cst_14 = arith.constant 1.000000e+00 : f32
    %24 = vector.broadcast %cst_14 : f32 to vector<32x1xf32>
    %25 = arith.addf %24, %23 : vector<32x1xf32>
    %26 = arith.divf %24, %25 : vector<32x1xf32>
    %c0_15 = arith.constant 0 : index
    %c0_16 = arith.constant 0 : index
    %27 = vector.load %arg6[%c0_15, %c0_16] : memref<1x32xf32, #tpu.memory_space<vmem>>, vector<1x32xf32>
    %cst_17 = arith.constant dense<0.000000e+00> : vector<1x256xf32>
    %28 = tpu.matmul %27, %1, %cst_17 {dimension_numbers = #tpu.dot_dimension_numbers<[1], [0], [0], [1], [0, 0, 1, 1], [], []>} : vector<1x32xf32>, vector<32x256xf32>, vector<1x256xf32> -> vector<1x256xf32>
    %29 = arith.negf %28 : vector<1x256xf32>
    %30 = math.exp %29 : vector<1x256xf32>
    %cst_18 = arith.constant 1.000000e+00 : f32
    %31 = vector.broadcast %cst_18 : f32 to vector<1x256xf32>
    %32 = arith.addf %31, %30 : vector<1x256xf32>
    %33 = arith.divf %31, %32 : vector<1x256xf32>
    %cst_19 = arith.constant 1.000000e+00 : f32
    %34 = vector.broadcast %cst_19 : f32 to vector<1x256xf32>
    %35 = arith.addf %34, %33 : vector<1x256xf32>
    %36 = vector.broadcast %35 : vector<1x256xf32> to vector<32x256xf32>
    %37 = vector.broadcast %26 : vector<32x1xf32> to vector<32x256xf32>
    %38 = arith.addf %36, %37 : vector<32x256xf32>
    %39 = arith.mulf %1, %38 : vector<32x256xf32>
    %c0_20 = arith.constant 0 : index
    %c0_21 = arith.constant 0 : index
    %c0_22 = arith.constant 0 : index
    %40 = vector.load %arg7[%c0_20, %c0_21, %c0_22] : memref<1x32x256xf32, #tpu.memory_space<vmem>>, vector<1x32x256xf32>
    %41 = vector.shape_cast %40 : vector<1x32x256xf32> to vector<32x256xf32>
    %42 = vector.shape_cast %39 : vector<32x256xf32> to vector<1x32x256xf32>
    tpu.vector_store %arg7[%c0_20, %c0_21, %c0_22], %42 {strides = array<i32>} : memref<1x32x256xf32, #tpu.memory_space<vmem>>, vector<1x32x256xf32>,
    return
  }
  func.func @transform_0(%arg0: i32) -> (i32, i32, i32) {
    %c0_i32 = arith.constant 0 : i32
    %c0_i32_0 = arith.constant 0 : i32
    %c0_i32_1 = arith.constant 0 : i32
    return %arg0, %c0_i32, %c0_i32_0 : i32, i32, i32
  }
  func.func @transform_1(%arg0: i32) -> (i32, i32) {
    %c0_i32 = arith.constant 0 : i32
    %c0_i32_0 = arith.constant 0 : i32
    %c0_i32_1 = arith.constant 0 : i32
    return %c0_i32, %c0_i32_0 : i32, i32
  }
  func.func @transform_2(%arg0: i32) -> (i32, i32) {
    %c0_i32 = arith.constant 0 : i32
    %c0_i32_0 = arith.constant 0 : i32
    %c0_i32_1 = arith.constant 0 : i32
    return %c0_i32, %c0_i32_0 : i32, i32
  }
  func.func @transform_3(%arg0: i32) -> (i32, i32) {
    %c0_i32 = arith.constant 0 : i32
    %c0_i32_0 = arith.constant 0 : i32
    %c0_i32_1 = arith.constant 0 : i32
    return %c0_i32, %c0_i32_0 : i32, i32
  }
  func.func @transform_4(%arg0: i32) -> (i32, i32) {
    %c0_i32 = arith.constant 0 : i32
    %c0_i32_0 = arith.constant 0 : i32
    %c0_i32_1 = arith.constant 0 : i32
    return %c0_i32, %c0_i32_0 : i32, i32
  }
  func.func @transform_5(%arg0: i32) -> (i32, i32) {
    %c0_i32 = arith.constant 0 : i32
    %c0_i32_0 = arith.constant 0 : i32
    %c0_i32_1 = arith.constant 0 : i32
    return %c0_i32, %c0_i32_0 : i32, i32
  }
  func.func @transform_6(%arg0: i32) -> (i32, i32, i32) {
    %c0_i32 = arith.constant 0 : i32
    %c0_i32_0 = arith.constant 0 : i32
    %c0_i32_1 = arith.constant 0 : i32
    return %arg0, %c0_i32, %c0_i32_0 : i32, i32, i32
  }
}

</mosaic_0001>

<llo_original>
// kernel: tpu_custom_call.1
$region0: #{tpu_custom_call.1}
  #allocation0 [shape = 'u32[]', space=smem, size = 0x4, offset = 0x4, fixed_abs, tag = 'smem constant byte address 0x4 - core index']
  #allocation1 [shape = 'u32[72,128]{1,0:T(1,128)}', space=vmem, size = 0x9000, scoped, tag = 'internal scratch']
  %s0 = inlined_call_operand.hbm [shape: f32[2,32,256], index: 0, kind: input, shape index: {}]
  %s1 = inlined_call_operand.vmem [shape: f32[32,2], index: 1, kind: input, shape index: {}]
  %s2 = inlined_call_operand.vmem [shape: f32[1,2], index: 2, kind: input, shape index: {}]
  %s3 = inlined_call_operand.vmem [shape: f32[32,2], index: 3, kind: input, shape index: {}]
  %s4 = inlined_call_operand.vmem [shape: f32[32,1], index: 4, kind: input, shape index: {}]
  %s5 = inlined_call_operand.vmem [shape: f32[1,32], index: 5, kind: input, shape index: {}]
  %s6 = inlined_call_operand.hbm [shape: f32[2,32,256], index: 6, kind: output, shape index: {}]
  %s7 = sld [smem:[#allocation0]]
  $region61: #{tpu_custom_call.1} parent=0
    _
  %s9 = ssub.s32 1, %s7
  %s10 = scalar_select 0, %s9, %s7
  $region1: #{tpu_custom_call.1} parent=0
    #allocation2 [shape = 'u8[65536]{0}', space=vmem, size = 0x10000, scoped, tag = 'input window, operand 0']
    #allocation3 [shape = 's32[2]{0}', space=sflag, size = 0x8, scoped, tag = 'scoped memory for tpu_custom_call.1']
    #allocation4 [shape = 's32[2]{0}', space=sflag, size = 0x8, scoped, tag = 'scoped memory for tpu_custom_call.1']
    #allocation5 [shape = 'u8[65536]{0}', space=vmem, size = 0x10000, scoped, tag = 'output window, operand 0']
    %11 = vsyncpa [#allocation3], 0
    %s12 = scalar_lea.sflag [#allocation3], 1
    %13 = vsyncpa %s12, 0
    %14 = vsyncpa [#allocation4], 0
    %s15 = scalar_lea.sflag [#allocation4], 1
    %16 = vsyncpa %s15, 0
    loop: start=0, step=1, limit=4
    $region2: #{tpu_custom_call.1} parent=1 // loop_pre_header
      _
    $region3: #{tpu_custom_call.1} parent=1 // loop_header
      %s18 = sphi 0, %s22
      %p19 = scmp.ge.s32.totalorder %s18, 4
      %s28 = sphi 0, %s30
      %s31 = sphi 0, %s28
      %s32 = sphi 0, %s31
      %s48 = sphi 0, %s32
      %s52 = sphi 0, %s52
      %s54 = sphi 0, %s52
      %s55 = sphi 0, %s54
      %s69 = sphi 0, %s55
      %s73 = sphi 0, %s73
      %s75 = sphi 0, %s73
      %s76 = sphi 0, %s75
      %s90 = sphi 0, %s76
      %s94 = sphi 0, %s94
      %s96 = sphi 0, %s94
      %s97 = sphi 0, %s96
      %s111 = sphi 0, %s97
      %s115 = sphi 0, %s115
      %s117 = sphi 0, %s115
      %s118 = sphi 0, %s117
      %s132 = sphi 0, %s118
      %s136 = sphi 0, %s136
      %s138 = sphi 0, %s136
      %s139 = sphi 0, %s138
      %s153 = sphi 0, %s139
      %s159 = sphi 0, %s161
      %s162 = sphi 0, %s159
      %s163 = sphi 0, %s162
      %s179 = sphi 0, %s163
    $region4: #{tpu_custom_call.1} parent=1 // loop_header_branch
      %21 = sbr.rel (%p19) target = $region8
    $region5: #{tpu_custom_call.1} parent=1 // loop_body
      %s23 = ssub.s32 %s18, 1
      %s24 = ssub.s32 %s18, 2
      %s25 = sadd.s32 %s18, 1
      %s26 = ssub.s32 %s18, %s25
      %p27 = scmp.eq.s32.totalorder %s26, 0
      %s29 = sadd.s32 %s28, 1
      %s30 = scalar_select %p27, %s28, %s29
      %p33 = pneg %p27
      %p34 = scmp.eq.s32.totalorder %s18, 1
      %p35 = por %p33, %p34
      %p36 = scmp.ne.s32.totalorder %s28, %s31
      %p37 = scmp.eq.s32.totalorder %s18, 0
      %p38 = por %p36, %p37
      %p39 = scmp.ne.s32.totalorder %s28, %s31
      %p40 = scmp.eq.s32.totalorder %s23, 1
      %p41 = por %p39, %p40
      %p42 = scmp.ne.s32.totalorder %s31, %s32
      %p43 = scmp.eq.s32.totalorder %s23, 0
      %p44 = por %p42, %p43
      %p45 = scmp.ne.s32.totalorder %s31, %s32
      %p46 = scmp.eq.s32.totalorder %s24, 1
      %p47 = por %p45, %p46
      %p49 = scmp.ne.s32.totalorder %s32, %s48
      %p50 = scmp.eq.s32.totalorder %s24, 0
      %p51 = por %p49, %p50
      %s53 = sadd.s32 %s52, 1
      %p56 = scmp.eq.s32.totalorder %s18, 1
      %p57 = scmp.ne.s32.totalorder %s52, %s54
      %p58 = scmp.eq.s32.totalorder %s18, 0
      %p59 = por %p57, %p58
      %p60 = scmp.ne.s32.totalorder %s52, %s54
      %p61 = scmp.eq.s32.totalorder %s23, 1
      %p62 = por %p60, %p61
      %p63 = scmp.ne.s32.totalorder %s54, %s55
      %p64 = scmp.eq.s32.totalorder %s23, 0
      %p65 = por %p63, %p64
      %p66 = scmp.ne.s32.totalorder %s54, %s55
      %p67 = scmp.eq.s32.totalorder %s24, 1
      %p68 = por %p66, %p67
      %p70 = scmp.ne.s32.totalorder %s55, %s69
      %p71 = scmp.eq.s32.totalorder %s24, 0
      %p72 = por %p70, %p71
      %s74 = sadd.s32 %s73, 1
      %p77 = scmp.eq.s32.totalorder %s18, 1
      %p78 = scmp.ne.s32.totalorder %s73, %s75
      %p79 = scmp.eq.s32.totalorder %s18, 0
      %p80 = por %p78, %p79
      %p81 = scmp.ne.s32.totalorder %s73, %s75
      %p82 = scmp.eq.s32.totalorder %s23, 1
      %p83 = por %p81, %p82
      %p84 = scmp.ne.s32.totalorder %s75, %s76
      %p85 = scmp.eq.s32.totalorder %s23, 0
      %p86 = por %p84, %p85
      %p87 = scmp.ne.s32.totalorder %s75, %s76
      %p88 = scmp.eq.s32.totalorder %s24, 1
      %p89 = por %p87, %p88
      %p91 = scmp.ne.s32.totalorder %s76, %s90
      %p92 = scmp.eq.s32.totalorder %s24, 0
      %p93 = por %p91, %p92
      %s95 = sadd.s32 %s94, 1
      %p98 = scmp.eq.s32.totalorder %s18, 1
      %p99 = scmp.ne.s32.totalorder %s94, %s96
      %p100 = scmp.eq.s32.totalorder %s18, 0
      %p101 = por %p99, %p100
      %p102 = scmp.ne.s32.totalorder %s94, %s96
      %p103 = scmp.eq.s32.totalorder %s23, 1
      %p104 = por %p102, %p103
      %p105 = scmp.ne.s32.totalorder %s96, %s97
      %p106 = scmp.eq.s32.totalorder %s23, 0
      %p107 = por %p105, %p106
      %p108 = scmp.ne.s32.totalorder %s96, %s97
      %p109 = scmp.eq.s32.totalorder %s24, 1
      %p110 = por %p108, %p109
      %p112 = scmp.ne.s32.totalorder %s97, %s111
      %p113 = scmp.eq.s32.totalorder %s24, 0
      %p114 = por %p112, %p113
      %s116 = sadd.s32 %s115, 1
      %p119 = scmp.eq.s32.totalorder %s18, 1
      %p120 = scmp.ne.s32.totalorder %s115, %s117
      %p121 = scmp.eq.s32.totalorder %s18, 0
      %p122 = por %p120, %p121
      %p123 = scmp.ne.s32.totalorder %s115, %s117
      %p124 = scmp.eq.s32.totalorder %s23, 1
      %p125 = por %p123, %p124
      %p126 = scmp.ne.s32.totalorder %s117, %s118
      %p127 = scmp.eq.s32.totalorder %s23, 0
      %p128 = por %p126, %p127
      %p129 = scmp.ne.s32.totalorder %s117, %s118
      %p130 = scmp.eq.s32.totalorder %s24, 1
      %p131 = por %p129, %p130
      %p133 = scmp.ne.s32.totalorder %s118, %s132
      %p134 = scmp.eq.s32.totalorder %s24, 0
      %p135 = por %p133, %p134
      %s137 = sadd.s32 %s136, 1
      %p140 = scmp.eq.s32.totalorder %s18, 1
      %p141 = scmp.ne.s32.totalorder %s136, %s138
      %p142 = scmp.eq.s32.totalorder %s18, 0
      %p143 = por %p141, %p142
      %p144 = scmp.ne.s32.totalorder %s136, %s138
      %p145 = scmp.eq.s32.totalorder %s23, 1
      %p146 = por %p144, %p145
      %p147 = scmp.ne.s32.totalorder %s138, %s139
      %p148 = scmp.eq.s32.totalorder %s23, 0
      %p149 = por %p147, %p148
      %p150 = scmp.ne.s32.totalorder %s138, %s139
      %p151 = scmp.eq.s32.totalorder %s24, 1
      %p152 = por %p150, %p151
      %p154 = scmp.ne.s32.totalorder %s139, %s153
      %p155 = scmp.eq.s32.totalorder %s24, 0
      %p156 = por %p154, %p155
      %s157 = ssub.s32 %s18, %s25
      %p158 = scmp.eq.s32.totalorder %s157, 0
      %s160 = sadd.s32 %s159, 1
      %s161 = scalar_select %p158, %s159, %s160
      %p164 = pneg %p158
      %p165 = scmp.eq.s32.totalorder %s18, 1
      %p166 = por %p164, %p165
      %p167 = scmp.ne.s32.totalorder %s159, %s162
      %p168 = scmp.eq.s32.totalorder %s18, 0
      %p169 = por %p167, %p168
      %p170 = scmp.ne.s32.totalorder %s159, %s162
      %p171 = scmp.eq.s32.totalorder %s23, 1
      %p172 = por %p170, %p171
      %p173 = scmp.ne.s32.totalorder %s162, %s163
      %p174 = scmp.eq.s32.totalorder %s23, 0
      %p175 = por %p173, %p174
      %p176 = scmp.ne.s32.totalorder %s162, %s163
      %p177 = scmp.eq.s32.totalorder %s24, 1
      %p178 = por %p176, %p177
      %p180 = scmp.ne.s32.totalorder %s163, %s179
      %p181 = scmp.eq.s32.totalorder %s24, 0
      %p182 = por %p180, %p181
      %p183 = scmp.le.s32.totalorder 1, %s18
      %p184 = scmp.lt.s32.totalorder %s18, 3
      %p185 = pnand %p183, %p184
      %p186 = pneg %p185
      // Predicated region
      $region9: #{tpu_custom_call.1} parent=5 // pred_check
        _
      $region10: #{tpu_custom_call.1} parent=5 // pred_check_branch
        %188 = sbr.rel (%p185) target = $region12
      $region11: #{tpu_custom_call.1} parent=5 // pred_region
        %s189 = ssub.s32 %s18, 1
        // Predicated region
        $region13: #{tpu_custom_call.1} parent=11 // pred_check
          %p190 = pneg %p65
        $region14: #{tpu_custom_call.1} parent=11 // pred_check_branch
          %192 = sbr.rel (%p190) target = $region16
        $region15: #{tpu_custom_call.1} parent=11 // pred_region
          _
        $region16: #{tpu_custom_call.1} parent=11 // pred_fallthru
          _
        // Predicated region
        $region17: #{tpu_custom_call.1} parent=11 // pred_check
          %p193 = pneg %p86
        $region18: #{tpu_custom_call.1} parent=11 // pred_check_branch
          %195 = sbr.rel (%p193) target = $region20
        $region19: #{tpu_custom_call.1} parent=11 // pred_region
          _
        $region20: #{tpu_custom_call.1} parent=11 // pred_fallthru
          _
        // Predicated region
        $region21: #{tpu_custom_call.1} parent=11 // pred_check
          %p196 = pneg %p107
        $region22: #{tpu_custom_call.1} parent=11 // pred_check_branch
          %198 = sbr.rel (%p196) target = $region24
        $region23: #{tpu_custom_call.1} parent=11 // pred_region
          _
        $region24: #{tpu_custom_call.1} parent=11 // pred_fallthru
          _
        // Predicated region
        $region25: #{tpu_custom_call.1} parent=11 // pred_check
          %p199 = pneg %p128
        $region26: #{tpu_custom_call.1} parent=11 // pred_check_branch
          %201 = sbr.rel (%p199) target = $region28
        $region27: #{tpu_custom_call.1} parent=11 // pred_region
          _
        $region28: #{tpu_custom_call.1} parent=11 // pred_fallthru
          _
        // Predicated region
        $region29: #{tpu_custom_call.1} parent=11 // pred_check
          %p202 = pneg %p149
        $region30: #{tpu_custom_call.1} parent=11 // pred_check_branch
          %204 = sbr.rel (%p202) target = $region32
        $region31: #{tpu_custom_call.1} parent=11 // pred_region
          _
        $region32: #{tpu_custom_call.1} parent=11 // pred_fallthru
          _
      $region12: #{tpu_custom_call.1} parent=5 // pred_fallthru
        _
      %p205 = scmp.lt.s32.totalorder %s18, 2
      // Predicated region
      $region33: #{tpu_custom_call.1} parent=5 // pred_check
        %p206 = pneg %p205
      $region34: #{tpu_custom_call.1} parent=5 // pred_check_branch
        %208 = sbr.rel (%p206) target = $region36
      $region35: #{tpu_custom_call.1} parent=5 // pred_region
        // Predicated region
        $region37: #{tpu_custom_call.1} parent=35 // pred_check
          %p209 = pneg %p38
        $region38: #{tpu_custom_call.1} parent=35 // pred_check_branch
          %211 = sbr.rel (%p209) target = $region40
        $region39: #{tpu_custom_call.1} parent=35 // pred_region
          %s212 = sand.u32 %s28, 1
          %s213 = scalar_lea.sflag [#allocation3], %s212
          %s214 = sand.u32 %s28, 1
          %s215 = smul.addr %s214, 64
          %s216 = scalar_lea.vmem [#allocation2], %s215
          %218 = vsyncadd %s213, 0
          %s219 = smul.addr %s18, 8
          %s220 = smul.addr %s219, 8
          %s221 = scalar_lea.hbm %s0, %s220
          %s222 = sshll.u32 %s221, 4
          %s223 = int_to_ptr.hbm [resolvable:$true] %s222
          %s224 = sshll.u32 %s216, 4
          %s225 = int_to_ptr.vmem [resolvable:$true] %s224
          %230 = dma.hbm_to_vmem [thread:$0]  %s223, 1024, %s225, %s213, 256, 256, 16
        $region40: #{tpu_custom_call.1} parent=35 // pred_fallthru
          _
      $region36: #{tpu_custom_call.1} parent=5 // pred_fallthru
        _
      %p231 = scmp.le.s32.totalorder 1, %s18
      %p232 = scmp.lt.s32.totalorder %s18, 3
      %p233 = pnand %p231, %p232
      %p234 = pneg %p233
      // Predicated region
      $region41: #{tpu_custom_call.1} parent=5 // pred_check
        _
      $region42: #{tpu_custom_call.1} parent=5 // pred_check_branch
        %236 = sbr.rel (%p233) target = $region44
      $region43: #{tpu_custom_call.1} parent=5 // pred_region
        %s237 = ssub.s32 %s18, 1
        %s238 = sand.u32 %s31, 1
        %s239 = scalar_lea.sflag [#allocation3], %s238
        %s240 = sand.u32 %s31, 1
        %s241 = smul.addr %s240, 64
        %s242 = scalar_lea.vmem [#allocation2], %s241
        // Predicated region
        $region45: #{tpu_custom_call.1} parent=43 // pred_check
          %p243 = pneg %p44
        $region46: #{tpu_custom_call.1} parent=43 // pred_check_branch
          %245 = sbr.rel (%p243) target = $region48
        $region47: #{tpu_custom_call.1} parent=43 // pred_region
          %247 = dma.done %s239, 1024
        $region48: #{tpu_custom_call.1} parent=43 // pred_fallthru
          _
        %s248 = sand.u32 %s31, 1
        %s249 = scalar_lea.sflag [#allocation3], %s248
        %s250 = sand.u32 %s31, 1
        %s251 = smul.addr %s250, 64
        %s252 = scalar_lea.vmem [#allocation2], %s251
        %p253 = pneg %p44
        %p254 = pneg %p41
        %p255 = pneg %p65
        %p256 = pneg %p62
        %p257 = pneg %p86
        %p258 = pneg %p83
        %p259 = pneg %p107
        %p260 = pneg %p104
        %p261 = pneg %p128
        %p262 = pneg %p125
        %p263 = pneg %p149
        %p264 = pneg %p146
        %p265 = pneg %p175
        %p266 = pneg %p172
        %s267 = sand.u32 %s162, 1
        %s268 = scalar_lea.sflag [#allocation4], %s267
        %s269 = sand.u32 %s162, 1
        %s270 = smul.addr %s269, 64
        %s271 = scalar_lea.vmem [#allocation5], %s270
        %v272 = vld [vmem:[%s242] sm:$0xff]
        %v273 = vld [vmem:[%s242 + $0x8] sm:$0xff]
        %v274 = vld [vmem:[%s242 + $0x10] sm:$0xff]
        %v275 = vld [vmem:[%s242 + $0x18] sm:$0xff]
        %v276 = vld [vmem:[%s242 + $0x20] sm:$0xff]
        %v277 = vld [vmem:[%s242 + $0x28] sm:$0xff]
        %v278 = vld [vmem:[%s242 + $0x30] sm:$0xff]
        %v279 = vld [vmem:[%s242 + $0x38] sm:$0xff]
        %v280 = vadd.f32 %v272, %v273
        %281 = vadd.xlane.f32.xlu0 %v280
        %v282 = vpop.xlane.xlu0 %281
        %v283 = vadd.f32 %v274, %v275
        %284 = vadd.xlane.f32.xlu0 %v283
        %v285 = vpop.xlane.xlu0 %284
        %v286 = vadd.f32 %v276, %v277
        %287 = vadd.xlane.f32.xlu0 %v286
        %v288 = vpop.xlane.xlu0 %287
        %v289 = vadd.f32 %v278, %v279
        %290 = vadd.xlane.f32.xlu0 %v289
        %v291 = vpop.xlane.xlu0 %290
        %v292 = vmul.f32 %v282, 0.00390625
        %v293 = vmul.f32 %v285, 0.00390625
        %v294 = vmul.f32 %v288, 0.00390625
        %v295 = vmul.f32 %v291, 0.00390625
        %v296 = vld [vmem:[%s1] sm:$0xff]
        %v297 = vld [vmem:[%s1 + $0x8] sm:$0xff]
        %v298 = vld [vmem:[%s1 + $0x10] sm:$0xff]
        %v299 = vld [vmem:[%s1 + $0x18] sm:$0xff]
        %v300 = vmul.f32 %v296, %v292
        %v301 = vmul.f32 %v297, %v293
        %v302 = vmul.f32 %v298, %v294
        %v303 = vmul.f32 %v299, %v295
        %vm304 = vcmask 15360
        %v305 = vsel %vm304, %v300, 0.0
        %v306 = vsel %vm304, %v301, 0.0
        %v307 = vadd.f32 %v305, %v306
        %v308 = vsel %vm304, %v302, 0.0
        %v309 = vadd.f32 %v307, %v308
        %v310 = vsel %vm304, %v303, 0.0
        %v311 = vadd.f32 %v309, %v310
        %v312 = vrot.slane %v311, 4
        %v313 = vadd.f32 %v311, %v312
        %v314 = vrot.slane %v313, 2
        %v315 = vadd.f32 %v313, %v314
        %v316 = vrot.slane %v315, 1
        %v317 = vadd.f32 %v315, %v316
        %v318 = vld [vmem:[%s2] sm:$0x1]
        %v319 = vadd.f32 %v317, %v318
        %v320 = vmax.f32 %v319, 0.0
        %v321 = vld [vmem:[%s3] sm:$0xff]
        %v322 = vld [vmem:[%s3 + $0x8] sm:$0xff]
        %v323 = vld [vmem:[%s3 + $0x10] sm:$0xff]
        %v324 = vld [vmem:[%s3 + $0x18] sm:$0xff]
        %v325 = vperm.slane %v320, 0
        %v326 = vmul.f32 %v321, %v325
        %v327 = vmul.f32 %v322, %v325
        %v328 = vmul.f32 %v323, %v325
        %v329 = vmul.f32 %v324, %v325
        %v330 = vsel %vm304, %v326, 0.0
        %331 = vadd.xlane.f32.xlu0 %v330
        %v332 = vpop.xlane.xlu0 %331
        %v333 = vsel %vm304, %v327, 0.0
        %334 = vadd.xlane.f32.xlu0 %v333
        %v335 = vpop.xlane.xlu0 %334
        %v336 = vsel %vm304, %v328, 0.0
        %337 = vadd.xlane.f32.xlu0 %v336
        %v338 = vpop.xlane.xlu0 %337
        %v339 = vsel %vm304, %v329, 0.0
        %340 = vadd.xlane.f32.xlu0 %v339
        %v341 = vpop.xlane.xlu0 %340
        %v342 = vld [vmem:[%s4] sm:$0xff]
        %v343 = vld [vmem:[%s4 + $0x8] sm:$0xff]
        %v344 = vld [vmem:[%s4 + $0x10] sm:$0xff]
        %v345 = vld [vmem:[%s4 + $0x18] sm:$0xff]
        %v346 = vadd.f32 %v332, %v342
        %v347 = vadd.f32 %v335, %v343
        %v348 = vadd.f32 %v338, %v344
        %v349 = vadd.f32 %v341, %v345
        %v350 = vxor.u32 %v346, 2147483648
        %v351 = vxor.u32 %v347, 2147483648
        %v352 = vxor.u32 %v348, 2147483648
        %v353 = vxor.u32 %v349, 2147483648
        %v354 = vmul.f32 %v350, 1.442695
        %v355 = vpow.pop %v354
        %v356 = vmul.f32 %v351, 1.442695
        %v357 = vpow.pop %v356
        %v358 = vmul.f32 %v352, 1.442695
        %v359 = vpow.pop %v358
        %v360 = vmul.f32 %v353, 1.442695
        %v361 = vpow.pop %v360
        %v362 = vadd.f32 %v355, 1.0
        %v363 = vadd.f32 %v357, 1.0
        %v364 = vadd.f32 %v359, 1.0
        %v365 = vadd.f32 %v361, 1.0
        %v366 = vrcp.pop %v362
        %v367 = vmul.f32 %v362, %v366
        %v368 = vsub.f32 1.0, %v367
        %v369 = vmul.f32 %v366, %v368
        %v370 = vadd.f32 %v366, %v369
        %vm371 = vweird.f32 %v362
        %vm372 = vweird.f32 %v366
        %vm373 = vmor %vm371, %vm372
        %v374 = vsel %vm373, %v366, %v370
        %v375 = vand.u32 2147483647, %v362
        %vm376 = vcmp.eq.f32.partialorder %v375, 8.507059e+37
        %v377 = vand.u32 %v362, 2147483648
        %v378 = vor.u32 1.1754944e-38, %v377
        %v379 = vsel %vm376, %v378, %v374
        %v380 = vmul.f32 1.0, %v379
        %v381 = vrcp.pop %v363
        %v382 = vmul.f32 %v363, %v381
        %v383 = vsub.f32 1.0, %v382
        %v384 = vmul.f32 %v381, %v383
        %v385 = vadd.f32 %v381, %v384
        %vm386 = vweird.f32 %v363
        %vm387 = vweird.f32 %v381
        %vm388 = vmor %vm386, %vm387
        %v389 = vsel %vm388, %v381, %v385
        %v390 = vand.u32 2147483647, %v363
        %vm391 = vcmp.eq.f32.partialorder %v390, 8.507059e+37
        %v392 = vand.u32 %v363, 2147483648
        %v393 = vor.u32 1.1754944e-38, %v392
        %v394 = vsel %vm391, %v393, %v389
        %v395 = vmul.f32 1.0, %v394
        %v396 = vrcp.pop %v364
        %v397 = vmul.f32 %v364, %v396
        %v398 = vsub.f32 1.0, %v397
        %v399 = vmul.f32 %v396, %v398
        %v400 = vadd.f32 %v396, %v399
        %vm401 = vweird.f32 %v364
        %vm402 = vweird.f32 %v396
        %vm403 = vmor %vm401, %vm402
        %v404 = vsel %vm403, %v396, %v400
        %v405 = vand.u32 2147483647, %v364
        %vm406 = vcmp.eq.f32.partialorder %v405, 8.507059e+37
        %v407 = vand.u32 %v364, 2147483648
        %v408 = vor.u32 1.1754944e-38, %v407
        %v409 = vsel %vm406, %v408, %v404
        %v410 = vmul.f32 1.0, %v409
        %v411 = vrcp.pop %v365
        %v412 = vmul.f32 %v365, %v411
        %v413 = vsub.f32 1.0, %v412
        %v414 = vmul.f32 %v411, %v413
        %v415 = vadd.f32 %v411, %v414
        %vm416 = vweird.f32 %v365
        %vm417 = vweird.f32 %v411
        %vm418 = vmor %vm416, %vm417
        %v419 = vsel %vm418, %v411, %v415
        %v420 = vand.u32 2147483647, %v365
        %vm421 = vcmp.eq.f32.partialorder %v420, 8.507059e+37
        %v422 = vand.u32 %v365, 2147483648
        %v423 = vor.u32 1.1754944e-38, %v422
        %v424 = vsel %vm421, %v423, %v419
        %v425 = vmul.f32 1.0, %v424
        %v426 = vld [vmem:[%s5] sm:$0x1]
        %vm427 = vcmask 261120
        %v429 = vsel %vm427, %v426, 0
        %431 = vmatpush.msra.mxu0 0.0
        %432 = vmatpush.msra.mxu0 0.0
        %433 = vmatpush.msra.mxu0 0.0
        %434 = vmatpush.msra.mxu0 0.0
        %435 = vmatpush.msra.mxu0 0.0
        %436 = vmatpush.msra.mxu0 0.0
        %437 = vmatpush.msra.mxu0 0.0
        %438 = vmatpush.msra.mxu0 0.0
        %439 = vmatpush.msra.mxu0 0.0
        %440 = vmatpush.msra.mxu0 0.0
        %441 = vmatpush.msra.mxu0 0.0
        %442 = vmatpush.msra.mxu0 0.0
        %443 = vmatpush.msra.mxu0 %v278
        %444 = vmatpush.msra.mxu0 %v276
        %445 = vmatpush.msra.mxu0 %v274
        %446 = vmatpush.msra.mxu0 %v272
        %447 = vmatmul.f32.gmra.mxu0 %v429
        %v448 = vpop.f32.mrf.mxu0
        %v449 = vadd.f32 0.0, %v448
        %450 = vdwg.mxu0
        %451 = vmatpush.msra.mxu0 0.0
        %452 = vmatpush.msra.mxu0 0.0
        %453 = vmatpush.msra.mxu0 0.0
        %454 = vmatpush.msra.mxu0 0.0
        %455 = vmatpush.msra.mxu0 0.0
        %456 = vmatpush.msra.mxu0 0.0
        %457 = vmatpush.msra.mxu0 0.0
        %458 = vmatpush.msra.mxu0 0.0
        %459 = vmatpush.msra.mxu0 0.0
        %460 = vmatpush.msra.mxu0 0.0
        %461 = vmatpush.msra.mxu0 0.0
        %462 = vmatpush.msra.mxu0 0.0
        %463 = vmatpush.msra.mxu0 %v279
        %464 = vmatpush.msra.mxu0 %v277
        %465 = vmatpush.msra.mxu0 %v275
        %466 = vmatpush.msra.mxu0 %v273
        %467 = vmatmul.f32.gmra.mxu0 %v429
        %v468 = vpop.f32.mrf.mxu0
        %v469 = vadd.f32 0.0, %v468
        %470 = vdwg.mxu0
        %v471 = vxor.u32 %v449, 2147483648
        %v472 = vxor.u32 %v469, 2147483648
        %v473 = vmul.f32 %v471, 1.442695
        %v474 = vpow.pop %v473
        %v475 = vmul.f32 %v472, 1.442695
        %v476 = vpow.pop %v475
        %v477 = vadd.f32 %v474, 1.0
        %v478 = vadd.f32 %v476, 1.0
        %v479 = vrcp.pop %v477
        %v480 = vmul.f32 %v477, %v479
        %v481 = vsub.f32 1.0, %v480
        %v482 = vmul.f32 %v479, %v481
        %v483 = vadd.f32 %v479, %v482
        %vm484 = vweird.f32 %v477
        %vm485 = vweird.f32 %v479
        %vm486 = vmor %vm484, %vm485
        %v487 = vsel %vm486, %v479, %v483
        %v488 = vand.u32 2147483647, %v477
        %vm489 = vcmp.eq.f32.partialorder %v488, 8.507059e+37
        %v490 = vand.u32 %v477, 2147483648
        %v491 = vor.u32 1.1754944e-38, %v490
        %v492 = vsel %vm489, %v491, %v487
        %v493 = vmul.f32 1.0, %v492
        %v494 = vrcp.pop %v478
        %v495 = vmul.f32 %v478, %v494
        %v496 = vsub.f32 1.0, %v495
        %v497 = vmul.f32 %v494, %v496
        %v498 = vadd.f32 %v494, %v497
        %vm499 = vweird.f32 %v478
        %vm500 = vweird.f32 %v494
        %vm501 = vmor %vm499, %vm500
        %v502 = vsel %vm501, %v494, %v498
        %v503 = vand.u32 2147483647, %v478
        %vm504 = vcmp.eq.f32.partialorder %v503, 8.507059e+37
        %v505 = vand.u32 %v478, 2147483648
        %v506 = vor.u32 1.1754944e-38, %v505
        %v507 = vsel %vm504, %v506, %v502
        %v508 = vmul.f32 1.0, %v507
        %v509 = vadd.f32 %v493, 1.0
        %v510 = vadd.f32 %v508, 1.0
        %v511 = vperm.slane %v509, 0
        %v512 = vperm.slane %v510, 0
        %514 = vset.pattern.permute.xlu0 0
        %515 = vperm.xlu0 %514, %v380
        %v516 = vpop.permute.xlu0 %515
        %519 = vset.pattern.permute.xlu0 0
        %520 = vperm.xlu0 %519, %v395
        %v521 = vpop.permute.xlu0 %520
        %524 = vset.pattern.permute.xlu0 0
        %525 = vperm.xlu0 %524, %v410
        %v526 = vpop.permute.xlu0 %525
        %529 = vset.pattern.permute.xlu0 0
        %530 = vperm.xlu0 %529, %v425
        %v531 = vpop.permute.xlu0 %530
        %v533 = vadd.f32 %v511, %v516
        %v534 = vadd.f32 %v512, %v516
        %v535 = vadd.f32 %v511, %v521
        %v536 = vadd.f32 %v512, %v521
        %v537 = vadd.f32 %v511, %v526
        %v538 = vadd.f32 %v512, %v526
        %v539 = vadd.f32 %v511, %v531
        %v540 = vadd.f32 %v512, %v531
        %v541 = vmul.f32 %v272, %v533
        %v542 = vmul.f32 %v273, %v534
        %v543 = vmul.f32 %v274, %v535
        %v544 = vmul.f32 %v275, %v536
        %v545 = vmul.f32 %v276, %v537
        %v546 = vmul.f32 %v277, %v538
        %v547 = vmul.f32 %v278, %v539
        %v548 = vmul.f32 %v279, %v540
        %549 = vst [vmem:[%s271] sm:$0xff] %v541
        %550 = vst [vmem:[%s271 + $0x8] sm:$0xff] %v542
        %551 = vst [vmem:[%s271 + $0x10] sm:$0xff] %v543
        %552 = vst [vmem:[%s271 + $0x18] sm:$0xff] %v544
        %553 = vst [vmem:[%s271 + $0x20] sm:$0xff] %v545
        %554 = vst [vmem:[%s271 + $0x28] sm:$0xff] %v546
        %555 = vst [vmem:[%s271 + $0x30] sm:$0xff] %v547
        %556 = vst [vmem:[%s271 + $0x38] sm:$0xff] %v548
        %s557 = sand.u32 %s162, 1
        %s558 = scalar_lea.sflag [#allocation4], %s557
        %s559 = sand.u32 %s162, 1
        %s560 = smul.addr %s559, 64
        %s561 = scalar_lea.vmem [#allocation5], %s560
        // Predicated region
        $region49: #{tpu_custom_call.1} parent=43 // pred_check
          %p562 = pneg %p172
        $region50: #{tpu_custom_call.1} parent=43 // pred_check_branch
          %564 = sbr.rel (%p562) target = $region52
        $region51: #{tpu_custom_call.1} parent=43 // pred_region
          %566 = vsyncadd %s558, 0
          %s567 = smul.addr %s23, 8
          %s568 = smul.addr %s567, 8
          %s569 = scalar_lea.hbm %s6, %s568
          %s570 = sshll.u32 %s561, 4
          %s571 = int_to_ptr.vmem [resolvable:$true] %s570
          %s572 = sshll.u32 %s569, 4
          %s573 = int_to_ptr.hbm [resolvable:$true] %s572
          %578 = dma.vmem_to_hbm [thread:$0]  %s571, 1024, %s573, %s558, 256, 256, 16
        $region52: #{tpu_custom_call.1} parent=43 // pred_fallthru
          _
      $region44: #{tpu_custom_call.1} parent=5 // pred_fallthru
        _
      %p579 = scmp.le.s32.totalorder 2, %s18
      // Predicated region
      $region53: #{tpu_custom_call.1} parent=5 // pred_check
        %p580 = pneg %p579
      $region54: #{tpu_custom_call.1} parent=5 // pred_check_branch
        %582 = sbr.rel (%p580) target = $region56
      $region55: #{tpu_custom_call.1} parent=5 // pred_region
        %s583 = ssub.s32 %s18, 2
        // Predicated region
        $region57: #{tpu_custom_call.1} parent=55 // pred_check
          %p584 = pneg %p178
        $region58: #{tpu_custom_call.1} parent=55 // pred_check_branch
          %586 = sbr.rel (%p584) target = $region60
        $region59: #{tpu_custom_call.1} parent=55 // pred_region
          %s587 = sand.u32 %s163, 1
          %s588 = scalar_lea.sflag [#allocation4], %s587
          %s589 = sand.u32 %s163, 1
          %s590 = smul.addr %s589, 64
          %s591 = scalar_lea.vmem [#allocation5], %s590
          %593 = dma.done %s588, 1024
        $region60: #{tpu_custom_call.1} parent=55 // pred_fallthru
          _
      $region56: #{tpu_custom_call.1} parent=5 // pred_fallthru
        _
    $region6: #{tpu_custom_call.1} parent=1 // loop_footer
      %s22 = sadd.s32 1, %s18
    $region7: #{tpu_custom_call.1} parent=1 // loop_footer_branch
      %17 = sbr.rel target = $region3
    $region8: #{tpu_custom_call.1} parent=1 // loop_exit
      _
    %594 = vsyncpa [#allocation3], 1
    %s595 = scalar_lea.sflag [#allocation3], 1
    %596 = vsyncpa %s595, 1
    %597 = vsyncpa [#allocation4], 1
    %s598 = scalar_lea.sflag [#allocation4], 1
    %599 = vsyncpa %s598, 1

</llo_original>
